<compile_context>
chip_gen: v5e
topology: v5e:2x2
jax: 0.10.0
libtpu: 0.0.40
codegen_flags: <defaults>
</compile_context>

<pallas_src>
import jax
import jax.numpy as jnp
from jax import lax
from jax.experimental import pallas as pl
from jax.experimental.pallas import tpu as pltpu

BN_EPS = 1e-5


# --------------------------------------------------------------------------------------
# small helpers
# --------------------------------------------------------------------------------------
def _adaptive_max_pool_t(sf, t_out):
    """F.adaptive_max_pool2d(sf, (t_out, 1)) for NCHW sf; returns (B, C, t_out)."""
    # TODO(synk): the ragged adaptive-pool windows are statically unrolled JAX slices in the
    # wrapper (tiny (B,256,T_sf,F_sf) tensor) rather than a dedicated Pallas kernel.
    _, _, t_in, _ = sf.shape
    cols = []
    for i in range(t_out):
        s = (i * t_in) // t_out
        e = -((-(i + 1) * t_in) // t_out)        # ceil((i+1)*t_in/t_out)
        cols.append(jnp.max(sf[:, :, s:e, :], axis=(2, 3)))
    return jnp.stack(cols, axis=2)


def _pick_frames_per_block(n_frames, max_frames=4):
    """Largest divisor of n_frames that is <= max_frames (keeps per-step VMEM ~<20 MiB)."""
    for f in range(min(max_frames, n_frames), 0, -1):
        if n_frames % f == 0:
            return f
    return 1


def _rep_spec(shape):
    """BlockSpec for an array that is identical for every grid step (weights / BN affines)."""
    zeros = (0,) * len(shape)
    return pl.BlockSpec(shape, lambda i: zeros)


def _bn_affine(sum_, sumsq, count, gamma, beta):
    """Fold training-mode BN batch statistics into a per-channel scale/shift."""
    mean = sum_ / count
    var = sumsq / count - mean * mean            # biased variance (what BN normalizes with)
    scale = gamma * lax.rsqrt(var + BN_EPS)
    shift = beta - mean * scale
    return scale, shift


# --------------------------------------------------------------------------------------
# kernels
# --------------------------------------------------------------------------------------
def _match_kernel(x_ref, w_ref, g_ref, b_ref, o_ref):
    """match: Conv2d(256,128,(3,1),pad=(1,0)) as ONE K=768 matmul + train-mode BN2d + ReLU.

    x_ref: (B*T, 768)  the 3 time taps concatenated along K.
    w_ref: (768, 128)  stacked tap weights.  Conv bias omitted (cancelled by BN).
    g_ref, b_ref: (1, 128) BN gamma / beta.   o_ref: (B*T, 128).
    """
    y = jnp.dot(x_ref[...], w_ref[...], preferred_element_type=jnp.float32)
    mean = jnp.mean(y, axis=0, keepdims=True)
    var = jnp.mean(y * y, axis=0, keepdims=True) - mean * mean
    scale = g_ref[...] * lax.rsqrt(var + BN_EPS)
    shift = b_ref[...] - mean * scale
    o_ref[...] = jnp.maximum(y * scale + shift, 0.0)


def _merge_stats_kernel(im_ref, sf_ref, w1i_ref, w1s_ref, sum_ref, sq_ref):
    """Pass A: conv1 (192->512, K split into im/sf blocks), emit BN1 partial sums per block.

    im_ref: (F, 784, 64)   sf_ref: (F, 1, 128)
    w1i_ref: (64, 512)     w1s_ref: (128, 512)
    sum_ref, sq_ref: (1, 1, 512) partial sum / sum of squares over the F*784 voxels.
    """
    F, P, Ci = im_ref.shape
    H = w1i_ref.shape[1]
    h_im = jnp.dot(im_ref[...].reshape(F * P, Ci), w1i_ref[...],
                   preferred_element_type=jnp.float32)                       # (F*P, 512)
    h_sf = jnp.dot(sf_ref[...].reshape(F, sf_ref.shape[-1]), w1s_ref[...],
                   preferred_element_type=jnp.float32)                       # (F, 512)
    h1 = h_im.reshape(F, P, H) + h_sf[:, None, :]                            # (F, P, 512)
    sum_ref[0] = jnp.sum(jnp.sum(h1, axis=1), axis=0, keepdims=True)
    sq_ref[0] = jnp.sum(jnp.sum(h1 * h1, axis=1), axis=0, keepdims=True)


def _merge_apply_kernel(im_ref, sf_ref, sfhi_ref, w1i_ref, w1s_ref, sc1_ref, sh1_ref,
                        w2_ref, sim_ref, y_ref, sum_ref, sq_ref):
    """Pass B: recompute conv1, BN1+ReLU (precomputed scale/shift), conv2 (512->128),
    add the `short` skip, write lane-dense 128-ch pre-BN2 output + BN2 partial sums.

    sfhi_ref: (F, 1, 128) = [0_64 | matched[64:128]]  (the sf half of `short`, per frame).
    sim_ref : (64, 128) selection matrix routing im into output channels 0..63 (im half of
              `short`) - done on the MXU to avoid sub-128-lane concats/partial stores.
    """
    F, P, Ci = im_ref.shape
    H = w1i_ref.shape[1]
    Co = w2_ref.shape[1]
    im2d = im_ref[...].reshape(F * P, Ci)
    sf2d = sf_ref[...].reshape(F, sf_ref.shape[-1])
    h_im = jnp.dot(im2d, w1i_ref[...], preferred_element_type=jnp.float32)
    h_sf = jnp.dot(sf2d, w1s_ref[...], preferred_element_type=jnp.float32)
    h1 = h_im.reshape(F, P, H) + h_sf[:, None, :]
    a1 = jnp.maximum(h1 * sc1_ref[...] + sh1_ref[...], 0.0)                  # BN1 + ReLU
    h2 = jnp.dot(a1.reshape(F * P, H), w2_ref[...], preferred_element_type=jnp.float32)
    skip_im = jnp.dot(im2d, sim_ref[...], preferred_element_type=jnp.float32)
    y = (h2 + skip_im).reshape(F, P, Co) + sfhi_ref[...]                     # + short
    y_ref[...] = y
    sum_ref[0] = jnp.sum(jnp.sum(y, axis=1), axis=0, keepdims=True)
    sq_ref[0] = jnp.sum(jnp.sum(y * y, axis=1), axis=0, keepdims=True)


def _bn_relu_kernel(y_ref, sc_ref, sh_ref, o_ref):
    """Pass C: final BatchNorm3d(128) (precomputed scale/shift) + ReLU, lane-dense IO."""
    o_ref[...] = jnp.maximum(y_ref[...] * sc_ref[...] + sh_ref[...], 0.0)


# --------------------------------------------------------------------------------------
# wrapper
# --------------------------------------------------------------------------------------
def merge_layer_forward(sf, im, params):
    """Pallas implementation of MergeLayer.forward (training-mode BatchNorms).

    sf: (B, 256, T_sf, F_sf)   im: (B, 64, T, 28, 28)   ->   (B, 128, T, 28, 28)
    """
    B, c_sf, T_sf, _ = sf.shape
    Bi, c_im, T_im, Hh, Ww = im.shape
    assert c_sf == 256 and (Bi, c_im, Hh, Ww) == (B, 64, 28, 28)

    # ---- shape logic copied from the PyTorch forward ---------------------------------
    frac = float(T_sf - 1) / T_im
    T_out = int(T_sf / frac)
    assert T_out == T_im, "time axes must line up for the channel concat"

    # ---- adaptive max pool (tiny tensor; plain-JAX glue) ------------------------------
    pooled = _adaptive_max_pool_t(sf, T_out)                    # (B, 256, T)
    pooled = jnp.transpose(pooled, (0, 2, 1))                   # (B, T, 256) channels-last
    pooled_pad = jnp.pad(pooled, ((0, 0), (1, 1), (0, 0)))      # conv time padding = 1

    # match conv: fuse the 3 time taps into one K=768 matmul (tiny tensor, so the K-concat
    # is prepared in the wrapper; the big image-branch activations are never duplicated).
    x_cat = jnp.concatenate(
        [pooled_pad[:, k:k + T_out, :] for k in range(3)], axis=-1
    ).reshape(B * T_out, 3 * 256)                               # (B*T, 768)
    w_cat = jnp.concatenate(
        [params["match_w"][:, :, k, 0].T for k in range(3)], axis=0
    ).astype(jnp.float32)                                       # (768, 128)
    g_m = params["match_gamma"].reshape(1, -1).astype(jnp.float32)
    b_m = params["match_beta"].reshape(1, -1).astype(jnp.float32)

    vmem = pl.BlockSpec(memory_space=pltpu.MemorySpace.VMEM)
    matched = pl.pallas_call(
        _match_kernel,
        out_shape=jax.ShapeDtypeStruct((B * T_out, 128), jnp.float32),
        in_specs=[vmem, vmem, vmem, vmem],
        out_specs=vmem,
    )(x_cat, w_cat, g_m, b_m)                                   # (B*T, 128)

    # ---- merge path layouts (channels-last, channels on the lane axis) ----------------
    n_frames = B * T_out
    P = Hh * Ww                                                 # 784 voxels per frame
    im_f = jnp.transpose(im, (0, 2, 3, 4, 1)).reshape(n_frames, P, 64).astype(jnp.float32)
    sf_f = matched.reshape(n_frames, 1, 128)
    sf_hi = jnp.concatenate(                                    # sf half of `short`
        [jnp.zeros((n_frames, 1, 64), jnp.float32), sf_f[:, :, 64:]], axis=-1)

    w1 = params["merge_w1"].reshape(512, 192).T.astype(jnp.float32)   # (192, 512)
    w1_im, w1_sf = w1[:64], w1[64:]                                   # K split: im | sf
    w2 = params["merge_w2"].reshape(128, 512).T.astype(jnp.float32)   # (512, 128)
    s_im = jnp.eye(64, 128, dtype=jnp.float32)                        # im -> out ch 0..63

    F_BLK = _pick_frames_per_block(n_frames)
    n_blocks = n_frames // F_BLK
    cparams = pltpu.CompilerParams(
        dimension_semantics=("parallel",),                  # shards over v7x's 2 TCs
        vmem_limit_bytes=48 * 1024 * 1024,                  # fits v7x's 64 MiB VMEM
    )

    frame_spec = pl.BlockSpec((F_BLK, P, 64), lambda i: (i, 0, 0))
    sfrow_spec = pl.BlockSpec((F_BLK, 1, 128), lambda i: (i, 0, 0))
    ypre_spec = pl.BlockSpec((F_BLK, P, 128), lambda i: (i, 0, 0))
    stat512_spec = pl.BlockSpec((1, 1, 512), lambda i: (i, 0, 0))
    stat128_spec = pl.BlockSpec((1, 1, 128), lambda i: (i, 0, 0))
    w1i_spec, w1s_spec = _rep_spec((64, 512)), _rep_spec((128, 512))
    w2_spec, sim_spec = _rep_spec((512, 128)), _rep_spec((64, 128))
    vec512_spec, vec128_spec = _rep_spec((1, 512)), _rep_spec((1, 128))

    # ---- pass A: conv1 + per-block BN1 batch-statistic partial sums --------------------
    stat512 = jax.ShapeDtypeStruct((n_blocks, 1, 512), jnp.float32)
    sum1, sq1 = pl.pallas_call(
        _merge_stats_kernel,
        grid=(n_blocks,),
        in_specs=[frame_spec, sfrow_spec, w1i_spec, w1s_spec],
        out_specs=(stat512_spec, stat512_spec),
        out_shape=(stat512, stat512),
        compiler_params=cparams,
    )(im_f, sf_f, w1_im, w1_sf)

    cnt = float(n_frames * P)
    g1 = params["merge_gamma1"].reshape(1, -1).astype(jnp.float32)
    be1 = params["merge_beta1"].reshape(1, -1).astype(jnp.float32)
    sc1, sh1 = _bn_affine(jnp.sum(sum1, axis=0), jnp.sum(sq1, axis=0), cnt, g1, be1)

    # ---- pass B: conv1 -> BN1+ReLU -> conv2 -> +short, write pre-BN2 + BN2 partials ----
    ypre_shape = jax.ShapeDtypeStruct((n_frames, P, 128), jnp.float32)
    stat128 = jax.ShapeDtypeStruct((n_blocks, 1, 128), jnp.float32)
    y_pre, sum2, sq2 = pl.pallas_call(
        _merge_apply_kernel,
        grid=(n_blocks,),
        in_specs=[frame_spec, sfrow_spec, sfrow_spec, w1i_spec, w1s_spec,
                  vec512_spec, vec512_spec, w2_spec, sim_spec],
        out_specs=(ypre_spec, stat128_spec, stat128_spec),
        out_shape=(ypre_shape, stat128, stat128),
        compiler_params=cparams,
    )(im_f, sf_f, sf_hi, w1_im, w1_sf, sc1, sh1, w2, s_im)

    g2 = params["out_gamma"].reshape(1, -1).astype(jnp.float32)
    be2 = params["out_beta"].reshape(1, -1).astype(jnp.float32)
    sc2, sh2 = _bn_affine(jnp.sum(sum2, axis=0), jnp.sum(sq2, axis=0), cnt, g2, be2)

    # ---- pass C: final BN + ReLU (pure elementwise, parallel grid, lane-dense IO) ------
    out_f = pl.pallas_call(
        _bn_relu_kernel,
        grid=(n_blocks,),
        in_specs=[ypre_spec, vec128_spec, vec128_spec],
        out_specs=ypre_spec,
        out_shape=ypre_shape,
        compiler_params=cparams,
    )(y_pre, sc2, sh2)

    out = out_f.reshape(B, T_out, Hh, Ww, 128)
    return jnp.transpose(out, (0, 4, 1, 2, 3))                  # -> (B, 128, T, 28, 28)


# --------------------------------------------------------------------------------------
# pure-JAX reference (mirrors the PyTorch module exactly, biases included)
# --------------------------------------------------------------------------------------
def _batchnorm_train(x, gamma, beta, axes):
    mean = jnp.mean(x, axis=axes, keepdims=True)
    var = jnp.mean(jnp.square(x - mean), axis=axes, keepdims=True)   # biased variance
    shp = [1] * x.ndim
    shp[1] = -1
    return (x - mean) * lax.rsqrt(var + BN_EPS) * gamma.reshape(shp) + beta.reshape(shp)


def reference(sf, im, params):
    B = sf.shape[0]
    T_sf, T_im = sf.shape[2], im.shape[2]
    frac = float(T_sf - 1) / T_im
    T_out = int(T_sf / frac)
    pooled = _adaptive_max_pool_t(sf, T_out)[..., None]              # (B, 256, T, 1)

    x = lax.conv_general_dilated(
        pooled, params["match_w"], window_strides=(1, 1), padding=[(1, 1), (0, 0)],
        dimension_numbers=("NCHW", "OIHW", "NCHW"), precision=lax.Precision.HIGHEST)
    x = x + params["match_b"].reshape(1, -1, 1, 1)
    x = _batchnorm_train(x, params["match_gamma"], params["match_beta"], (0, 2, 3))
    x = jnp.maximum(x, 0.0)
    matched = x[:, :, :, 0]                                          # (B, 128, T)

    tile = jnp.broadcast_to(matched[:, :, :, None, None], (B, 128, T_out, 28, 28))
    concat = jnp.concatenate([im, tile], axis=1)                     # (B, 192, T, 28, 28)
    short = jnp.concatenate([concat[:, :64], concat[:, -64:]], axis=1)

    w1 = params["merge_w1"].reshape(512, 192)
    h1 = jnp.einsum("bcthw,oc->bothw", concat, w1,
                    precision=lax.Precision.HIGHEST) + params["merge_b1"].reshape(1, -1, 1, 1, 1)
    h1 = _batchnorm_train(h1, params["merge_gamma1"], params["merge_beta1"], (0, 2, 3, 4))
    h1 = jnp.maximum(h1, 0.0)

    w2 = params["merge_w2"].reshape(128, 512)
    h2 = jnp.einsum("bcthw,oc->bothw", h1, w2,
                    precision=lax.Precision.HIGHEST) + params["merge_b2"].reshape(1, -1, 1, 1, 1)
    y = h2 + short
    y = _batchnorm_train(y, params["out_gamma"], params["out_beta"], (0, 2, 3, 4))
    return jnp.maximum(y, 0.0)


# --------------------------------------------------------------------------------------
if __name__ == "__main__":
    key = jax.random.PRNGKey(0)
    ks = jax.random.split(key, 14)
    B, T_im, T_sf, F_sf = 2, 4, 8, 8        # 28x28 spatial, 256/192/512/128 ch fixed by module
    sf = jax.random.normal(ks[0], (B, 256, T_sf, F_sf), jnp.float32)
    im = jax.random.normal(ks[1], (B, 64, T_im, 28, 28), jnp.float32)
    params = {
        "match_w": 0.05 * jax.random.normal(ks[2], (128, 256, 3, 1), jnp.float32),
        "match_b": 0.1 * jax.random.normal(ks[3], (128,), jnp.float32),
        "match_gamma": 1.0 + 0.1 * jax.random.normal(ks[4], (128,), jnp.float32),
        "match_beta": 0.1 * jax.random.normal(ks[5], (128,), jnp.float32),
        "merge_w1": 0.05 * jax.random.normal(ks[6], (512, 192, 1, 1, 1), jnp.float32),
        "merge_b1": 0.1 * jax.random.normal(ks[7], (512,), jnp.float32),
        "merge_gamma1": 1.0 + 0.1 * jax.random.normal(ks[8], (512,), jnp.float32),
        "merge_beta1": 0.1 * jax.random.normal(ks[9], (512,), jnp.float32),
        "merge_w2": 0.05 * jax.random.normal(ks[10], (128, 512, 1, 1, 1), jnp.float32),
        "merge_b2": 0.1 * jax.random.normal(ks[11], (128,), jnp.float32),
        "out_gamma": 1.0 + 0.1 * jax.random.normal(ks[12], (128,), jnp.float32),
        "out_beta": 0.1 * jax.random.normal(ks[13], (128,), jnp.float32),
    }

    out = merge_layer_forward(sf, im, params)
    out = jax.block_until_ready(out)
    assert out.shape == (B, 128, T_im, 28, 28), out.shape

    ref = jax.block_until_ready(reference(sf, im, params))
    max_err = float(jnp.max(jnp.abs(out - ref)))
    mean_err = float(jnp.mean(jnp.abs(out - ref)))
    # tolerance accounts for default (bf16-pass) MXU precision vs HIGHEST-precision reference
    assert max_err < 8e-2 and mean_err < 1e-2, (max_err, mean_err)
    print("KERNEL_OK")
</pallas_src>

<mosaic_0001>
module attributes {stable_mosaic.version = 11 : i64} {
  func.func @_match_kernel(%arg0: memref<8x768xf32, #tpu.memory_space<vmem>>, %arg1: memref<768x128xf32, #tpu.memory_space<vmem>>, %arg2: memref<1x128xf32, #tpu.memory_space<vmem>>, %arg3: memref<1x128xf32, #tpu.memory_space<vmem>>, %arg4: memref<8x128xf32, #tpu.memory_space<vmem>>) attributes {dimension_semantics = [], scalar_prefetch = 0 : i64, scratch_operands = 0 : i64, tpu.core_type = #tpu.core_type<tc>} {
    %c0 = arith.constant 0 : index
    %c0_0 = arith.constant 0 : index
    %0 = vector.load %arg0[%c0, %c0_0] : memref<8x768xf32, #tpu.memory_space<vmem>>, vector<8x768xf32>
    %c0_1 = arith.constant 0 : index
    %c0_2 = arith.constant 0 : index
    %1 = vector.load %arg1[%c0_1, %c0_2] : memref<768x128xf32, #tpu.memory_space<vmem>>, vector<768x128xf32>
    %cst = arith.constant dense<0.000000e+00> : vector<8x128xf32>
    %2 = tpu.matmul %0, %1, %cst {dimension_numbers = #tpu.dot_dimension_numbers<[1], [0], [0], [1], [0, 0, 1, 1], [], []>} : vector<8x768xf32>, vector<768x128xf32>, vector<8x128xf32> -> vector<8x128xf32>
    %cst_3 = arith.constant dense<0.000000e+00> : vector<128xf32>
    %3 = vector.multi_reduction <add>, %2, %cst_3 [0] : vector<8x128xf32> to vector<128xf32>
    %4 = vector.shape_cast %3 : vector<128xf32> to vector<1x128xf32>
    %cst_4 = arith.constant 8.000000e+00 : f32
    %5 = vector.broadcast %cst_4 : f32 to vector<1x128xf32>
    %6 = arith.divf %4, %5 : vector<1x128xf32>
    %7 = arith.mulf %2, %2 : vector<8x128xf32>
    %cst_5 = arith.constant dense<0.000000e+00> : vector<128xf32>
    %8 = vector.multi_reduction <add>, %7, %cst_5 [0] : vector<8x128xf32> to vector<128xf32>
    %9 = vector.shape_cast %8 : vector<128xf32> to vector<1x128xf32>
    %cst_6 = arith.constant 8.000000e+00 : f32
    %10 = vector.broadcast %cst_6 : f32 to vector<1x128xf32>
    %11 = arith.divf %9, %10 : vector<1x128xf32>
    %12 = arith.mulf %6, %6 : vector<1x128xf32>
    %13 = arith.subf %11, %12 : vector<1x128xf32>
    %c0_7 = arith.constant 0 : index
    %c0_8 = arith.constant 0 : index
    %14 = vector.load %arg2[%c0_7, %c0_8] : memref<1x128xf32, #tpu.memory_space<vmem>>, vector<1x128xf32>
    %cst_9 = arith.constant 9.99999974E-6 : f32
    %15 = vector.broadcast %cst_9 : f32 to vector<1x128xf32>
    %16 = arith.addf %13, %15 : vector<1x128xf32>
    %17 = math.rsqrt %16 : vector<1x128xf32>
    %18 = arith.mulf %14, %17 : vector<1x128xf32>
    %c0_10 = arith.constant 0 : index
    %c0_11 = arith.constant 0 : index
    %19 = vector.load %arg3[%c0_10, %c0_11] : memref<1x128xf32, #tpu.memory_space<vmem>>, vector<1x128xf32>
    %20 = arith.mulf %6, %18 : vector<1x128xf32>
    %21 = arith.subf %19, %20 : vector<1x128xf32>
    %22 = vector.broadcast %18 : vector<1x128xf32> to vector<8x128xf32>
    %23 = arith.mulf %2, %22 : vector<8x128xf32>
    %24 = vector.broadcast %21 : vector<1x128xf32> to vector<8x128xf32>
    %25 = arith.addf %23, %24 : vector<8x128xf32>
    %cst_12 = arith.constant 0.000000e+00 : f32
    %26 = vector.broadcast %cst_12 : f32 to vector<8x128xf32>
    %27 = arith.maximumf %25, %26 : vector<8x128xf32>
    %c0_13 = arith.constant 0 : index
    %c0_14 = arith.constant 0 : index
    %28 = vector.load %arg4[%c0_13, %c0_14] : memref<8x128xf32, #tpu.memory_space<vmem>>, vector<8x128xf32>
    tpu.vector_store %arg4[%c0_13, %c0_14], %27 {strides = array<i32>} : memref<8x128xf32, #tpu.memory_space<vmem>>, vector<8x128xf32>,
    return
  }
}

</mosaic_0001>

<llo_original>
// kernel: tpu_custom_call.1
$region0: #{tpu_custom_call.1}
  #allocation0 [shape = 'u32[]', space=smem, size = 0x4, offset = 0x4, fixed_abs, tag = 'smem constant byte address 0x4 - core index']
  #allocation1 [shape = 'u32[72,128]{1,0:T(1,128)}', space=vmem, size = 0x9000, scoped, tag = 'internal scratch']
  %s0 = inlined_call_operand.hbm [shape: f32[8,768], index: 0, kind: input, shape index: {}]
  %s1 = inlined_call_operand.hbm [shape: f32[768,128], index: 1, kind: input, shape index: {}]
  %s2 = inlined_call_operand.vmem [shape: f32[1,128], index: 2, kind: input, shape index: {}]
  %s3 = inlined_call_operand.vmem [shape: f32[1,128], index: 3, kind: input, shape index: {}]
  %s4 = inlined_call_operand.hbm [shape: f32[8,128], index: 4, kind: output, shape index: {}]
  %s5 = sld [smem:[#allocation0]]
  $region34: #{tpu_custom_call.1} parent=0
    _
  %s7 = ssub.s32 1, %s5
  %s8 = scalar_select 0, %s7, %s5
  $region1: #{tpu_custom_call.1} parent=0
    #allocation2 [shape = 'u8[24576]{0}', space=vmem, size = 0x6000, scoped, tag = 'input window, operand 0, single buffered']
    #allocation3 [shape = 's32[1]{0}', space=sflag, size = 0x4, scoped, tag = 'scoped memory for tpu_custom_call.1']
    #allocation4 [shape = 's32[1]{0}', space=sflag, size = 0x4, scoped, tag = 'scoped memory for tpu_custom_call.1']
    #allocation5 [shape = 'u8[393216]{0}', space=vmem, size = 0x60000, scoped, tag = 'input window, operand 1, single buffered']
    #allocation6 [shape = 's32[1]{0}', space=sflag, size = 0x4, scoped, tag = 'scoped memory for tpu_custom_call.1']
    #allocation7 [shape = 'u8[4096]{0}', space=vmem, size = 0x1000, scoped, tag = 'output window, operand 0, single buffered']
    %9 = vsyncpa [#allocation3], 0
    %10 = vsyncpa [#allocation6], 0
    %11 = vsyncpa [#allocation4], 0
    // Predicated region
    $region2: #{tpu_custom_call.1} parent=1 // pred_check
      _
    $region3: #{tpu_custom_call.1} parent=1 // pred_check_branch
      %13 = sbr.rel (0) target = $region5
    $region4: #{tpu_custom_call.1} parent=1 // pred_region
      %15 = vsyncadd [#allocation3], 0
      %s17 = sshll.u32 %s0, 4
      %s18 = int_to_ptr.hbm [resolvable:$true] %s17
      %s19 = sshll.u32 [#allocation2], 4
      %s20 = int_to_ptr.vmem [resolvable:$true] %s19
      %22 = dma.hbm_to_vmem [thread:$0]  %s18, 768, %s20, [#allocation3]
    $region5: #{tpu_custom_call.1} parent=1 // pred_fallthru
      _
    // Predicated region
    $region6: #{tpu_custom_call.1} parent=1 // pred_check
      _
    $region7: #{tpu_custom_call.1} parent=1 // pred_check_branch
      %24 = sbr.rel (0) target = $region9
    $region8: #{tpu_custom_call.1} parent=1 // pred_region
      %26 = vsyncadd [#allocation6], 0
      %s27 = sshll.u32 %s1, 4
      %s28 = int_to_ptr.hbm [resolvable:$true] %s27
      %s29 = sshll.u32 [#allocation5], 4
      %s30 = int_to_ptr.vmem [resolvable:$true] %s29
      %35 = dma.hbm_to_vmem [thread:$0]  %s28, 12288, %s30, [#allocation6], 128, 128, 8
    $region9: #{tpu_custom_call.1} parent=1 // pred_fallthru
      _
    // Predicated region
    $region10: #{tpu_custom_call.1} parent=1 // pred_check
      _
    $region11: #{tpu_custom_call.1} parent=1 // pred_check_branch
      %37 = sbr.rel (0) target = $region13
    $region12: #{tpu_custom_call.1} parent=1 // pred_region
      _
    $region13: #{tpu_custom_call.1} parent=1 // pred_fallthru
      _
    // Predicated region
    $region14: #{tpu_custom_call.1} parent=1 // pred_check
      _
    $region15: #{tpu_custom_call.1} parent=1 // pred_check_branch
      %39 = sbr.rel (0) target = $region17
    $region16: #{tpu_custom_call.1} parent=1 // pred_region
      _
    $region17: #{tpu_custom_call.1} parent=1 // pred_fallthru
      _
    // Predicated region
    $region18: #{tpu_custom_call.1} parent=1 // pred_check
      _
    $region19: #{tpu_custom_call.1} parent=1 // pred_check_branch
      %41 = sbr.rel (0) target = $region21
    $region20: #{tpu_custom_call.1} parent=1 // pred_region
      %43 = dma.done [#allocation3], 768
    $region21: #{tpu_custom_call.1} parent=1 // pred_fallthru
      _
    // Predicated region
    $region22: #{tpu_custom_call.1} parent=1 // pred_check
      _
    $region23: #{tpu_custom_call.1} parent=1 // pred_check_branch
      %45 = sbr.rel (0) target = $region25
    $region24: #{tpu_custom_call.1} parent=1 // pred_region
      %47 = dma.done [#allocation6], 12288
    $region25: #{tpu_custom_call.1} parent=1 // pred_fallthru
      _
    %v48 = vld [vmem:[#allocation2] sm:$0xff]
    %v49 = vld [vmem:[#allocation2 + $0x8] sm:$0xff]
    %v50 = vld [vmem:[#allocation2 + $0x10] sm:$0xff]
    %v51 = vld [vmem:[#allocation2 + $0x18] sm:$0xff]
    %v52 = vld [vmem:[#allocation2 + $0x20] sm:$0xff]
    %v53 = vld [vmem:[#allocation2 + $0x28] sm:$0xff]
    %v54 = vld [vmem:[#allocation5] sm:$0xff]
    %v55 = vld [vmem:[#allocation5 + $0x8] sm:$0xff]
    %v56 = vld [vmem:[#allocation5 + $0x10] sm:$0xff]
    %v57 = vld [vmem:[#allocation5 + $0x18] sm:$0xff]
    %v58 = vld [vmem:[#allocation5 + $0x20] sm:$0xff]
    %v59 = vld [vmem:[#allocation5 + $0x28] sm:$0xff]
    %v60 = vld [vmem:[#allocation5 + $0x30] sm:$0xff]
    %v61 = vld [vmem:[#allocation5 + $0x38] sm:$0xff]
    %v62 = vld [vmem:[#allocation5 + $0x40] sm:$0xff]
    %v63 = vld [vmem:[#allocation5 + $0x48] sm:$0xff]
    %v64 = vld [vmem:[#allocation5 + $0x50] sm:$0xff]
    %v65 = vld [vmem:[#allocation5 + $0x58] sm:$0xff]
    %v66 = vld [vmem:[#allocation5 + $0x60] sm:$0xff]
    %v67 = vld [vmem:[#allocation5 + $0x68] sm:$0xff]
    %v68 = vld [vmem:[#allocation5 + $0x70] sm:$0xff]
    %v69 = vld [vmem:[#allocation5 + $0x78] sm:$0xff]
    %v70 = vld [vmem:[#allocation5 + $0x80] sm:$0xff]
    %v71 = vld [vmem:[#allocation5 + $0x88] sm:$0xff]
    %v72 = vld [vmem:[#allocation5 + $0x90] sm:$0xff]
    %v73 = vld [vmem:[#allocation5 + $0x98] sm:$0xff]
    %v74 = vld [vmem:[#allocation5 + $0xa0] sm:$0xff]
    %v75 = vld [vmem:[#allocation5 + $0xa8] sm:$0xff]
    %v76 = vld [vmem:[#allocation5 + $0xb0] sm:$0xff]
    %v77 = vld [vmem:[#allocation5 + $0xb8] sm:$0xff]
    %v78 = vld [vmem:[#allocation5 + $0xc0] sm:$0xff]
    %v79 = vld [vmem:[#allocation5 + $0xc8] sm:$0xff]
    %v80 = vld [vmem:[#allocation5 + $0xd0] sm:$0xff]
    %v81 = vld [vmem:[#allocation5 + $0xd8] sm:$0xff]
    %v82 = vld [vmem:[#allocation5 + $0xe0] sm:$0xff]
    %v83 = vld [vmem:[#allocation5 + $0xe8] sm:$0xff]
    %v84 = vld [vmem:[#allocation5 + $0xf0] sm:$0xff]
    %v85 = vld [vmem:[#allocation5 + $0xf8] sm:$0xff]
    %v86 = vld [vmem:[#allocation5 + $0x100] sm:$0xff]
    %v87 = vld [vmem:[#allocation5 + $0x108] sm:$0xff]
    %v88 = vld [vmem:[#allocation5 + $0x110] sm:$0xff]
    %v89 = vld [vmem:[#allocation5 + $0x118] sm:$0xff]
    %v90 = vld [vmem:[#allocation5 + $0x120] sm:$0xff]
    %v91 = vld [vmem:[#allocation5 + $0x128] sm:$0xff]
    %v92 = vld [vmem:[#allocation5 + $0x130] sm:$0xff]
    %v93 = vld [vmem:[#allocation5 + $0x138] sm:$0xff]
    %v94 = vld [vmem:[#allocation5 + $0x140] sm:$0xff]
    %v95 = vld [vmem:[#allocation5 + $0x148] sm:$0xff]
    %v96 = vld [vmem:[#allocation5 + $0x150] sm:$0xff]
    %v97 = vld [vmem:[#allocation5 + $0x158] sm:$0xff]
    %v98 = vld [vmem:[#allocation5 + $0x160] sm:$0xff]
    %v99 = vld [vmem:[#allocation5 + $0x168] sm:$0xff]
    %v100 = vld [vmem:[#allocation5 + $0x170] sm:$0xff]
    %v101 = vld [vmem:[#allocation5 + $0x178] sm:$0xff]
    %v102 = vld [vmem:[#allocation5 + $0x180] sm:$0xff]
    %v103 = vld [vmem:[#allocation5 + $0x188] sm:$0xff]
    %v104 = vld [vmem:[#allocation5 + $0x190] sm:$0xff]
    %v105 = vld [vmem:[#allocation5 + $0x198] sm:$0xff]
    %v106 = vld [vmem:[#allocation5 + $0x1a0] sm:$0xff]
    %v107 = vld [vmem:[#allocation5 + $0x1a8] sm:$0xff]
    %v108 = vld [vmem:[#allocation5 + $0x1b0] sm:$0xff]
    %v109 = vld [vmem:[#allocation5 + $0x1b8] sm:$0xff]
    %v110 = vld [vmem:[#allocation5 + $0x1c0] sm:$0xff]
    %v111 = vld [vmem:[#allocation5 + $0x1c8] sm:$0xff]
    %v112 = vld [vmem:[#allocation5 + $0x1d0] sm:$0xff]
    %v113 = vld [vmem:[#allocation5 + $0x1d8] sm:$0xff]
    %v114 = vld [vmem:[#allocation5 + $0x1e0] sm:$0xff]
    %v115 = vld [vmem:[#allocation5 + $0x1e8] sm:$0xff]
    %v116 = vld [vmem:[#allocation5 + $0x1f0] sm:$0xff]
    %v117 = vld [vmem:[#allocation5 + $0x1f8] sm:$0xff]
    %v118 = vld [vmem:[#allocation5 + $0x200] sm:$0xff]
    %v119 = vld [vmem:[#allocation5 + $0x208] sm:$0xff]
    %v120 = vld [vmem:[#allocation5 + $0x210] sm:$0xff]
    %v121 = vld [vmem:[#allocation5 + $0x218] sm:$0xff]
    %v122 = vld [vmem:[#allocation5 + $0x220] sm:$0xff]
    %v123 = vld [vmem:[#allocation5 + $0x228] sm:$0xff]
    %v124 = vld [vmem:[#allocation5 + $0x230] sm:$0xff]
    %v125 = vld [vmem:[#allocation5 + $0x238] sm:$0xff]
    %v126 = vld [vmem:[#allocation5 + $0x240] sm:$0xff]
    %v127 = vld [vmem:[#allocation5 + $0x248] sm:$0xff]
    %v128 = vld [vmem:[#allocation5 + $0x250] sm:$0xff]
    %v129 = vld [vmem:[#allocation5 + $0x258] sm:$0xff]
    %v130 = vld [vmem:[#allocation5 + $0x260] sm:$0xff]
    %v131 = vld [vmem:[#allocation5 + $0x268] sm:$0xff]
    %v132 = vld [vmem:[#allocation5 + $0x270] sm:$0xff]
    %v133 = vld [vmem:[#allocation5 + $0x278] sm:$0xff]
    %v134 = vld [vmem:[#allocation5 + $0x280] sm:$0xff]
    %v135 = vld [vmem:[#allocation5 + $0x288] sm:$0xff]
    %v136 = vld [vmem:[#allocation5 + $0x290] sm:$0xff]
    %v137 = vld [vmem:[#allocation5 + $0x298] sm:$0xff]
    %v138 = vld [vmem:[#allocation5 + $0x2a0] sm:$0xff]
    %v139 = vld [vmem:[#allocation5 + $0x2a8] sm:$0xff]
    %v140 = vld [vmem:[#allocation5 + $0x2b0] sm:$0xff]
    %v141 = vld [vmem:[#allocation5 + $0x2b8] sm:$0xff]
    %v142 = vld [vmem:[#allocation5 + $0x2c0] sm:$0xff]
    %v143 = vld [vmem:[#allocation5 + $0x2c8] sm:$0xff]
    %v144 = vld [vmem:[#allocation5 + $0x2d0] sm:$0xff]
    %v145 = vld [vmem:[#allocation5 + $0x2d8] sm:$0xff]
    %v146 = vld [vmem:[#allocation5 + $0x2e0] sm:$0xff]
    %v147 = vld [vmem:[#allocation5 + $0x2e8] sm:$0xff]
    %v148 = vld [vmem:[#allocation5 + $0x2f0] sm:$0xff]
    %v149 = vld [vmem:[#allocation5 + $0x2f8] sm:$0xff]
    %150 = vmatpush.msra.mxu0 %v69
    %151 = vmatpush.msra.mxu0 %v68
    %152 = vmatpush.msra.mxu0 %v67
    %153 = vmatpush.msra.mxu0 %v66
    %154 = vmatpush.msra.mxu0 %v65
    %155 = vmatpush.msra.mxu0 %v64
    %156 = vmatpush.msra.mxu0 %v63
    %157 = vmatpush.msra.mxu0 %v62
    %158 = vmatpush.msra.mxu0 %v61
    %159 = vmatpush.msra.mxu0 %v60
    %160 = vmatpush.msra.mxu0 %v59
    %161 = vmatpush.msra.mxu0 %v58
    %162 = vmatpush.msra.mxu0 %v57
    %163 = vmatpush.msra.mxu0 %v56
    %164 = vmatpush.msra.mxu0 %v55
    %165 = vmatpush.msra.mxu0 %v54
    %166 = vmatmul.f32.gmra.mxu0 %v48
    %v167 = vpop.f32.mrf.mxu0
    %v168 = vadd.f32 0.0, %v167
    %169 = vdwg.mxu0
    %170 = vmatpush.msra.mxu0 %v85
    %171 = vmatpush.msra.mxu0 %v84
    %172 = vmatpush.msra.mxu0 %v83
    %173 = vmatpush.msra.mxu0 %v82
    %174 = vmatpush.msra.mxu0 %v81
    %175 = vmatpush.msra.mxu0 %v80
    %176 = vmatpush.msra.mxu0 %v79
    %177 = vmatpush.msra.mxu0 %v78
    %178 = vmatpush.msra.mxu0 %v77
    %179 = vmatpush.msra.mxu0 %v76
    %180 = vmatpush.msra.mxu0 %v75
    %181 = vmatpush.msra.mxu0 %v74
    %182 = vmatpush.msra.mxu0 %v73
    %183 = vmatpush.msra.mxu0 %v72
    %184 = vmatpush.msra.mxu0 %v71
    %185 = vmatpush.msra.mxu0 %v70
    %186 = vmatmul.f32.gmra.mxu0 %v49
    %v187 = vpop.f32.mrf.mxu0
    %v188 = vadd.f32 %v168, %v187
    %189 = vdwg.mxu0
    %190 = vmatpush.msra.mxu0 %v101
    %191 = vmatpush.msra.mxu0 %v100
    %192 = vmatpush.msra.mxu0 %v99
    %193 = vmatpush.msra.mxu0 %v98
    %194 = vmatpush.msra.mxu0 %v97
    %195 = vmatpush.msra.mxu0 %v96
    %196 = vmatpush.msra.mxu0 %v95
    %197 = vmatpush.msra.mxu0 %v94
    %198 = vmatpush.msra.mxu0 %v93
    %199 = vmatpush.msra.mxu0 %v92
    %200 = vmatpush.msra.mxu0 %v91
    %201 = vmatpush.msra.mxu0 %v90
    %202 = vmatpush.msra.mxu0 %v89
    %203 = vmatpush.msra.mxu0 %v88
    %204 = vmatpush.msra.mxu0 %v87
    %205 = vmatpush.msra.mxu0 %v86
    %206 = vmatmul.f32.gmra.mxu0 %v50
    %v207 = vpop.f32.mrf.mxu0
    %v208 = vadd.f32 %v188, %v207
    %209 = vdwg.mxu0
    %210 = vmatpush.msra.mxu0 %v117
    %211 = vmatpush.msra.mxu0 %v116
    %212 = vmatpush.msra.mxu0 %v115
    %213 = vmatpush.msra.mxu0 %v114
    %214 = vmatpush.msra.mxu0 %v113
    %215 = vmatpush.msra.mxu0 %v112
    %216 = vmatpush.msra.mxu0 %v111
    %217 = vmatpush.msra.mxu0 %v110
    %218 = vmatpush.msra.mxu0 %v109
    %219 = vmatpush.msra.mxu0 %v108
    %220 = vmatpush.msra.mxu0 %v107
    %221 = vmatpush.msra.mxu0 %v106
    %222 = vmatpush.msra.mxu0 %v105
    %223 = vmatpush.msra.mxu0 %v104
    %224 = vmatpush.msra.mxu0 %v103
    %225 = vmatpush.msra.mxu0 %v102
    %226 = vmatmul.f32.gmra.mxu0 %v51
    %v227 = vpop.f32.mrf.mxu0
    %v228 = vadd.f32 %v208, %v227
    %229 = vdwg.mxu0
    %230 = vmatpush.msra.mxu0 %v133
    %231 = vmatpush.msra.mxu0 %v132
    %232 = vmatpush.msra.mxu0 %v131
    %233 = vmatpush.msra.mxu0 %v130
    %234 = vmatpush.msra.mxu0 %v129
    %235 = vmatpush.msra.mxu0 %v128
    %236 = vmatpush.msra.mxu0 %v127
    %237 = vmatpush.msra.mxu0 %v126
    %238 = vmatpush.msra.mxu0 %v125
    %239 = vmatpush.msra.mxu0 %v124
    %240 = vmatpush.msra.mxu0 %v123
    %241 = vmatpush.msra.mxu0 %v122
    %242 = vmatpush.msra.mxu0 %v121
    %243 = vmatpush.msra.mxu0 %v120
    %244 = vmatpush.msra.mxu0 %v119
    %245 = vmatpush.msra.mxu0 %v118
    %246 = vmatmul.f32.gmra.mxu0 %v52
    %v247 = vpop.f32.mrf.mxu0
    %v248 = vadd.f32 %v228, %v247
    %249 = vdwg.mxu0
    %250 = vmatpush.msra.mxu0 %v149
    %251 = vmatpush.msra.mxu0 %v148
    %252 = vmatpush.msra.mxu0 %v147
    %253 = vmatpush.msra.mxu0 %v146
    %254 = vmatpush.msra.mxu0 %v145
    %255 = vmatpush.msra.mxu0 %v144
    %256 = vmatpush.msra.mxu0 %v143
    %257 = vmatpush.msra.mxu0 %v142
    %258 = vmatpush.msra.mxu0 %v141
    %259 = vmatpush.msra.mxu0 %v140
    %260 = vmatpush.msra.mxu0 %v139
    %261 = vmatpush.msra.mxu0 %v138
    %262 = vmatpush.msra.mxu0 %v137
    %263 = vmatpush.msra.mxu0 %v136
    %264 = vmatpush.msra.mxu0 %v135
    %265 = vmatpush.msra.mxu0 %v134
    %266 = vmatmul.f32.gmra.mxu0 %v53
    %v267 = vpop.f32.mrf.mxu0
    %v268 = vadd.f32 %v248, %v267
    %269 = vdwg.mxu0
    %v270 = vrot.slane %v268, 4
    %v271 = vadd.f32 %v268, %v270
    %v272 = vrot.slane %v271, 2
    %v273 = vadd.f32 %v271, %v272
    %v274 = vrot.slane %v273, 1
    %v275 = vadd.f32 %v273, %v274
    %v276 = vrcp.pop 8.0
    %v277 = vmul.f32 8.0, %v276
    %v278 = vsub.f32 1.0, %v277
    %v279 = vmul.f32 %v276, %v278
    %v280 = vadd.f32 %v276, %v279
    %vm281 = vweird.f32 %v276
    %v282 = vsel %vm281, %v276, %v280
    %v283 = vmul.f32 %v275, %v282
    %v284 = vmul.f32 %v268, %v268
    %v285 = vrot.slane %v284, 4
    %v286 = vadd.f32 %v284, %v285
    %v287 = vrot.slane %v286, 2
    %v288 = vadd.f32 %v286, %v287
    %v289 = vrot.slane %v288, 1
    %v290 = vadd.f32 %v288, %v289
    %v291 = vmul.f32 %v290, %v282
    %v292 = vmul.f32 %v283, %v283
    %v293 = vsub.f32 %v291, %v292
    %v294 = vld [vmem:[%s2] sm:$0x1]
    %v295 = vadd.f32 %v293, 1e-05
    %v296 = vrsqrt.pop %v295
    %v297 = vmul.f32 %v296, %v295
    %v298 = vmul.f32 %v297, %v296
    %v299 = vmul.f32 0.5, %v298
    %v300 = vsub.f32 1.5, %v299
    %v301 = vmul.f32 %v296, %v300
    %vm302 = vweird.f32 %v295
    %vm303 = vweird.f32 %v296
    %vm304 = vmor %vm302, %vm303
    %v305 = vsel %vm304, %v296, %v301
    %v306 = vmul.f32 %v294, %v305
    %v307 = vld [vmem:[%s3] sm:$0x1]
    %v308 = vmul.f32 %v283, %v306
    %v309 = vsub.f32 %v307, %v308
    %v311 = vperm.slane %v306, 0
    %v313 = vmul.f32 %v268, %v311
    %v315 = vperm.slane %v309, 0
    %v317 = vadd.f32 %v313, %v315
    %v318 = vmax.f32 %v317, 0.0
    %319 = vst [vmem:[#allocation7] sm:$0xff] %v318
    // Predicated region
    $region26: #{tpu_custom_call.1} parent=1 // pred_check
      _
    $region27: #{tpu_custom_call.1} parent=1 // pred_check_branch
      %321 = sbr.rel (0) target = $region29
    $region28: #{tpu_custom_call.1} parent=1 // pred_region
      %323 = vsyncadd [#allocation4], 0
      %s325 = sshll.u32 [#allocation7], 4
      %s326 = int_to_ptr.vmem [resolvable:$true] %s325
      %s327 = sshll.u32 %s4, 4
      %s328 = int_to_ptr.hbm [resolvable:$true] %s327
      %330 = dma.vmem_to_hbm [thread:$0]  %s326, 128, %s328, [#allocation4]
    $region29: #{tpu_custom_call.1} parent=1 // pred_fallthru
      _
    // Predicated region
    $region30: #{tpu_custom_call.1} parent=1 // pred_check
      _
    $region31: #{tpu_custom_call.1} parent=1 // pred_check_branch
      %332 = sbr.rel (0) target = $region33
    $region32: #{tpu_custom_call.1} parent=1 // pred_region
      %334 = dma.done [#allocation4], 128
    $region33: #{tpu_custom_call.1} parent=1 // pred_fallthru
      _
    %335 = vsyncpa [#allocation3], 1
    %336 = vsyncpa [#allocation6], 1
    %337 = vsyncpa [#allocation4], 1

</llo_original>
